<compile_context>
chip_gen: v6e
topology: v6e:2x2x1
jax: 0.10.0
libtpu: 0.0.40
codegen_flags: <defaults>
</compile_context>

<pallas_src>
import functools

import jax
import jax.numpy as jnp
from jax import lax
from jax.experimental import pallas as pl
from jax.experimental.pallas import tpu as pltpu


# ---------------------------------------------------------------------------
# Linear kernel (fc_q): y = x @ w + b, tiled over rows, "parallel" grid axis.
# ---------------------------------------------------------------------------
def _linear_kernel(x_ref, w_ref, b_ref, o_ref):
    acc = jnp.dot(x_ref[...], w_ref[...], preferred_element_type=jnp.float32)
    o_ref[...] = (acc + b_ref[...].astype(jnp.float32)).astype(o_ref.dtype)


def pallas_linear(x2d, w, b, *, tile_m=512):
    M, K = x2d.shape
    Kw, Nout = w.shape
    assert K == Kw
    b2d = b.reshape(1, Nout)

    if M <= tile_m:
        tm = M                      # single block == full dim (no (8,128) rule)
    else:
        tm = (tile_m // 8) * 8      # tiled: second-minor block dim 8-aligned
    grid_m = pl.cdiv(M, tm)         # edge block masked on store; rows independent

    # Explicit scoped-VMEM budget (generous): double-buffered row tiles +
    # resident weight/bias; keeps v5e's 16 MiB default from being a surprise.
    bpe = jnp.dtype(x2d.dtype).itemsize
    need = 2 * (tm * K + tm * Nout) * bpe + (K * Nout + Nout) * bpe
    vmem_limit = int(min(max(4 * need + (2 << 20), 8 << 20), 64 << 20))

    return pl.pallas_call(
        _linear_kernel,
        out_shape=jax.ShapeDtypeStruct((M, Nout), x2d.dtype),
        grid=(grid_m,),
        in_specs=[
            pl.BlockSpec((tm, K), lambda i: (i, 0)),
            pl.BlockSpec((K, Nout), lambda i: (0, 0)),
            pl.BlockSpec((1, Nout), lambda i: (0, 0)),
        ],
        out_specs=pl.BlockSpec((tm, Nout), lambda i: (i, 0)),
        compiler_params=pltpu.CompilerParams(
            dimension_semantics=("parallel",),
            vmem_limit_bytes=vmem_limit),
    )(x2d, w, b2d)


# ---------------------------------------------------------------------------
# Fused kernel: fc_kv + multi-head attention + output projection, per batch.
# ---------------------------------------------------------------------------
def _fused_attn_kernel(q_ref, x_ref, w_kv_t_ref, b_kv_ref, w_proj_ref, b_proj_ref,
                       attn_ref, out_ref, kv_scr, ctx_scr,
                       *, num_heads, head_dim, seq_len, num_classes, scale):
    H, hd, N, nc = num_heads, head_dim, seq_len, num_classes
    C = H * hd

    # ---- fc_kv, emitted directly in transposed (2C, N) layout so the per-head
    #      k/v slices below are sublane slices (no sub-128 lane shuffles).
    x_b = x_ref[0]                                                  # (N, C)
    kv_t = lax.dot_general(w_kv_t_ref[...], x_b,
                           (((1,), (1,)), ((), ())),
                           preferred_element_type=jnp.float32)      # (2C, N) f32
    kv_t = kv_t + b_kv_ref[...].astype(jnp.float32)                 # (2C, 1) bcast
    kv_scr[...] = kv_t.astype(kv_scr.dtype)

    # ---- per-head attention. H is small and static; every per-head result is
    #      stored immediately (streaming), so live ranges stay bounded and all
    #      slice offsets are static (best-supported lowering).
    for h in range(H):
        q_h = q_ref[0, pl.ds(h * nc, nc), :]                        # (nc, hd)
        k_h = kv_scr[pl.ds(h * hd, hd), :]                          # (hd, N)
        v_h = kv_scr[pl.ds(C + h * hd, hd), :]                      # (hd, N)

        # q @ k^T in f32; scale applied once to the f32 scores (matches ref).
        s = jnp.dot(q_h, k_h, preferred_element_type=jnp.float32) * scale  # (nc, N)
        # Pre-softmax logits (attn1) already in the final (nc, H, N) order:
        # lane block h of the (nc, H*N) slab.  attn_drop is identity (p=0.0).
        attn_ref[0, :, pl.ds(h * N, N)] = s

        m = jnp.max(s, axis=-1, keepdims=True)
        p = jnp.exp(s - m)
        denom = jnp.sum(p, axis=-1, keepdims=True)
        p = p * pl.reciprocal(denom, approx=False)   # exact: keeps 1e-4 parity

        ctx_h = lax.dot_general(p.astype(kv_scr.dtype), v_h,
                                (((1,), (1,)), ((), ())),
                                preferred_element_type=jnp.float32)  # (nc, hd)
        ctx_scr[pl.ds(h * nc, nc), :] = ctx_h.astype(ctx_scr.dtype)

    # ---- fused output projection: ctx never leaves VMEM.
    # PyTorch's (B, H, nc, hd) -> (B, nc, C) "mixed" reshape is the row-major
    # regrouping of the (H*nc, hd) chunk buffer: lane block j of the (nc, C)
    # proj input is the stride-H sublane gather (rows j, j+H, ...) of ctx_scr.
    mixed = jnp.concatenate(
        [ctx_scr[pl.ds(j, nc, stride=H), :] for j in range(H)], axis=-1)  # (nc, C)
    out = jnp.dot(mixed, w_proj_ref[...], preferred_element_type=jnp.float32)
    out = out + b_proj_ref[...].astype(jnp.float32)
    out_ref[0] = out.astype(out_ref.dtype)           # proj_drop identity (p=0.0)


def fused_query_attention(q_flat, x, w_kv_t, b_kv_col, w_proj, b_proj_row,
                          *, num_heads, num_classes, scale):
    """q_flat: (B, H*nc, hd) (free reshape of fc_q output), x: (B, N, C).
    Returns attn logits (B, nc, H*N) f32 in final permuted order and the
    projected output (B, nc, C)."""
    B, N, C = x.shape
    H = num_heads
    hd = C // H
    nc = num_classes
    R = H * nc
    dtype = x.dtype

    kernel = functools.partial(
        _fused_attn_kernel, num_heads=H, head_dim=hd, seq_len=N,
        num_classes=nc, scale=scale)

    # Explicit scoped-VMEM budget with generous headroom (v7x has 64 MiB only).
    # For very long N this kernel would need an N-tiled online-softmax path;
    # at module-typical shapes the full-N block fits comfortably.
    bpe = jnp.dtype(dtype).itemsize
    need = (2 * (R * hd + N * C) * bpe                 # double-buffered q / x
            + 2 * (nc * H * N * 4 + nc * C * bpe)      # double-buffered outputs
            + (2 * C * C + 2 * C + C * C + C) * bpe    # resident weights/biases
            + (2 * C * N + R * hd) * bpe)              # VMEM scratch
    vmem_limit = int(min(max(4 * need + (2 << 20), 8 << 20), 64 << 20))

    attn, out = pl.pallas_call(
        kernel,
        out_shape=(
            jax.ShapeDtypeStruct((B, nc, H * N), jnp.float32),  # attn1, final order
            jax.ShapeDtypeStruct((B, nc, C), dtype),            # proj output
        ),
        grid=(B,),
        in_specs=[
            pl.BlockSpec((1, R, hd), lambda b: (b, 0, 0)),      # q chunks
            pl.BlockSpec((1, N, C), lambda b: (b, 0, 0)),       # x
            pl.BlockSpec((2 * C, C), lambda b: (0, 0)),         # w_kv^T (resident)
            pl.BlockSpec((2 * C, 1), lambda b: (0, 0)),         # b_kv (resident)
            pl.BlockSpec((C, C), lambda b: (0, 0)),             # w_proj (resident)
            pl.BlockSpec((1, C), lambda b: (0, 0)),             # b_proj (resident)
        ],
        out_specs=(
            pl.BlockSpec((1, nc, H * N), lambda b: (b, 0, 0)),
            pl.BlockSpec((1, nc, C), lambda b: (b, 0, 0)),
        ),
        scratch_shapes=[
            pltpu.VMEM((2 * C, N), dtype),   # kv, transposed layout
            pltpu.VMEM((R, hd), dtype),      # per-head context chunks
        ],
        compiler_params=pltpu.CompilerParams(
            dimension_semantics=("parallel",),   # batch axis shards across TCs
            vmem_limit_bytes=vmem_limit),
    )(q_flat, x, w_kv_t, b_kv_col, w_proj, b_proj_row)
    return attn, out


# ---------------------------------------------------------------------------
# Module forward: 2 Pallas kernels + only FREE row-major reshapes as glue.
# ---------------------------------------------------------------------------
def query_attention_forward(q, x, params, num_heads):
    B, N, C = x.shape
    num_classes = q.shape[1]
    head_dim = C // num_heads
    scale = head_dim ** (-0.5)

    # fc_q (qkv_bias=False -> zero bias): row-tiled Pallas linear.
    q_proj = pallas_linear(q.reshape(B * num_classes, C), params["w_q"], params["b_q"])
    # FREE row-major reshape: the module's mixed (B,nc,C)->(B,H,nc,hd) head view
    # flattened over (H,nc) — inside the kernel head h's rows are contiguous.
    q_flat = q_proj.reshape(B, num_heads * num_classes, head_dim)

    # fc_kv + attention + proj fused in ONE kernel; kv / ctx never touch HBM.
    w_kv_t = params["w_kv"].T                       # (2C, C): emit kv transposed
    b_kv_col = params["b_kv"].reshape(2 * C, 1)
    b_proj_row = params["b_proj"].reshape(1, C)
    attn_flat, xo = fused_query_attention(
        q_flat, x, w_kv_t, b_kv_col, params["w_proj"], b_proj_row,
        num_heads=num_heads, num_classes=num_classes, scale=scale)

    attn = attn_flat.reshape(B, num_classes, num_heads, N)   # free; already permuted
    return xo, attn


# Pure-JAX reference (exact PyTorch semantics) for correctness checking.
def query_attention_reference(q, x, params, num_heads):
    B, N, C = x.shape
    num_classes = q.shape[1]
    head_dim = C // num_heads
    scale = head_dim ** (-0.5)

    q_proj = q.reshape(B * num_classes, C) @ params["w_q"] + params["b_q"]
    q_proj = q_proj.reshape(B, num_heads, num_classes, head_dim)
    kv = (x.reshape(B * N, C) @ params["w_kv"] + params["b_kv"]).reshape(
        B, N, 2, num_heads, head_dim).transpose(2, 0, 3, 1, 4)
    k, v = kv[0], kv[1]
    attn1 = jnp.einsum("bhqd,bhkd->bhqk", q_proj, k) * scale
    attn2 = jax.nn.softmax(attn1, axis=-1)
    xo = jnp.einsum("bhqk,bhkd->bhqd", attn2, v).reshape(B, num_classes, C)
    xo = xo.reshape(B * num_classes, C) @ params["w_proj"] + params["b_proj"]
    xo = xo.reshape(B, num_classes, C)
    attn = attn1.transpose(0, 2, 1, 3)
    return xo, attn


if __name__ == "__main__":
    # Small shapes consistent with the module's forward.
    B, N, C = 2, 16, 32
    num_heads = 4
    num_classes = 8

    key = jax.random.PRNGKey(0)
    kq, kx, kwq, kwkv, kwp, kbp = jax.random.split(key, 6)

    q_in = jax.random.normal(kq, (B, num_classes, C), jnp.float32)
    x_in = jax.random.normal(kx, (B, N, C), jnp.float32)

    # Deterministic synthetic parameters. Stored as (in, out) so y = x @ W.
    params = {
        "w_q": jax.random.normal(kwq, (C, C), jnp.float32) * 0.05,
        "b_q": jnp.zeros((C,), jnp.float32),           # qkv_bias=False
        "w_kv": jax.random.normal(kwkv, (C, 2 * C), jnp.float32) * 0.05,
        "b_kv": jnp.zeros((2 * C,), jnp.float32),      # qkv_bias=False
        "w_proj": jax.random.normal(kwp, (C, C), jnp.float32) * 0.05,
        "b_proj": jax.random.normal(kbp, (C,), jnp.float32) * 0.05,
    }

    out_x, out_attn = query_attention_forward(q_in, x_in, params, num_heads)
    out_x = jax.block_until_ready(out_x)
    out_attn = jax.block_until_ready(out_attn)

    ref_x, ref_attn = query_attention_reference(q_in, x_in, params, num_heads)
    assert out_x.shape == (B, num_classes, C)
    assert out_attn.shape == (B, num_classes, num_heads, N)
    assert jnp.allclose(out_x, ref_x, atol=1e-4, rtol=1e-4)
    assert jnp.allclose(out_attn, ref_attn, atol=1e-4, rtol=1e-4)

    print("KERNEL_OK")
</pallas_src>

<mosaic_0001>
module attributes {stable_mosaic.version = 11 : i64} {
  func.func @_linear_kernel(%arg0: i32, %arg1: memref<16x32xf32, #tpu.memory_space<vmem>>, %arg2: memref<32x32xf32, #tpu.memory_space<vmem>>, %arg3: memref<1x32xf32, #tpu.memory_space<vmem>>, %arg4: memref<16x32xf32, #tpu.memory_space<vmem>>) attributes {dimension_semantics = [#tpu.dimension_semantics<parallel>], iteration_bounds = array<i64: 1>, scalar_prefetch = 0 : i64, scratch_operands = 0 : i64, tpu.core_type = #tpu.core_type<tc>, window_params = [{transform_indices = @transform_0, window_bounds = array<i64: 16, 32>}, {pipeline_mode = #tpu.pipeline_mode<synchronous>, transform_indices = @transform_1, window_bounds = array<i64: 32, 32>}, {pipeline_mode = #tpu.pipeline_mode<synchronous>, transform_indices = @transform_2, window_bounds = array<i64: 1, 32>}, {transform_indices = @transform_3, window_bounds = array<i64: 16, 32>}]} {
    %c0 = arith.constant 0 : index
    %c0_0 = arith.constant 0 : index
    %0 = vector.load %arg1[%c0, %c0_0] : memref<16x32xf32, #tpu.memory_space<vmem>>, vector<16x32xf32>
    %c0_1 = arith.constant 0 : index
    %c0_2 = arith.constant 0 : index
    %1 = vector.load %arg2[%c0_1, %c0_2] : memref<32x32xf32, #tpu.memory_space<vmem>>, vector<32x32xf32>
    %cst = arith.constant dense<0.000000e+00> : vector<16x32xf32>
    %2 = tpu.matmul %0, %1, %cst {dimension_numbers = #tpu.dot_dimension_numbers<[1], [0], [0], [1], [0, 0, 1, 1], [], []>} : vector<16x32xf32>, vector<32x32xf32>, vector<16x32xf32> -> vector<16x32xf32>
    %c0_3 = arith.constant 0 : index
    %c0_4 = arith.constant 0 : index
    %3 = vector.load %arg3[%c0_3, %c0_4] : memref<1x32xf32, #tpu.memory_space<vmem>>, vector<1x32xf32>
    %4 = vector.broadcast %3 : vector<1x32xf32> to vector<16x32xf32>
    %5 = arith.addf %2, %4 : vector<16x32xf32>
    %c0_5 = arith.constant 0 : index
    %c0_6 = arith.constant 0 : index
    %6 = vector.load %arg4[%c0_5, %c0_6] : memref<16x32xf32, #tpu.memory_space<vmem>>, vector<16x32xf32>
    tpu.vector_store %arg4[%c0_5, %c0_6], %5 {strides = array<i32>} : memref<16x32xf32, #tpu.memory_space<vmem>>, vector<16x32xf32>,
    return
  }
  func.func @transform_0(%arg0: i32) -> (i32, i32) {
    %c0_i32 = arith.constant 0 : i32
    %c0_i32_0 = arith.constant 0 : i32
    return %arg0, %c0_i32 : i32, i32
  }
  func.func @transform_1(%arg0: i32) -> (i32, i32) {
    %c0_i32 = arith.constant 0 : i32
    %c0_i32_0 = arith.constant 0 : i32
    %c0_i32_1 = arith.constant 0 : i32
    return %c0_i32, %c0_i32_0 : i32, i32
  }
  func.func @transform_2(%arg0: i32) -> (i32, i32) {
    %c0_i32 = arith.constant 0 : i32
    %c0_i32_0 = arith.constant 0 : i32
    %c0_i32_1 = arith.constant 0 : i32
    return %c0_i32, %c0_i32_0 : i32, i32
  }
  func.func @transform_3(%arg0: i32) -> (i32, i32) {
    %c0_i32 = arith.constant 0 : i32
    %c0_i32_0 = arith.constant 0 : i32
    return %arg0, %c0_i32 : i32, i32
  }
}

</mosaic_0001>

<llo_original>
// kernel: tpu_custom_call.1
$region0: #{tpu_custom_call.1}
  #allocation0 [shape = 'u32[]', space=smem, size = 0x4, offset = 0x4, fixed_abs, tag = 'smem constant byte address 0x4 - core index']
  #allocation1 [shape = 'u32[144,128]{1,0:T(1,128)}', space=vmem, size = 0x12000, scoped, tag = 'internal scratch']
  %s0 = inlined_call_operand.hbm [shape: f32[16,32], index: 0, kind: input, shape index: {}]
  %s1 = inlined_call_operand.hbm [shape: f32[32,32], index: 1, kind: input, shape index: {}]
  %s2 = inlined_call_operand.vmem [shape: f32[1,32], index: 2, kind: input, shape index: {}]
  %s3 = inlined_call_operand.hbm [shape: f32[16,32], index: 3, kind: output, shape index: {}]
  %s4 = sld [smem:[#allocation0]]
  $region30: #{tpu_custom_call.1} parent=0
    _
  %s6 = ssub.s32 1, %s4
  %s7 = scalar_select 0, %s6, %s4
  $region1: #{tpu_custom_call.1} parent=0
    #allocation2 [shape = 'u8[8192]{0}', space=vmem, size = 0x2000, scoped, tag = 'input window, operand 0, single buffered']
    #allocation3 [shape = 's32[1]{0}', space=sflag, size = 0x4, scoped, tag = 'scoped memory for tpu_custom_call.1']
    #allocation4 [shape = 's32[1]{0}', space=sflag, size = 0x4, scoped, tag = 'scoped memory for tpu_custom_call.1']
    #allocation5 [shape = 'u8[16384]{0}', space=vmem, size = 0x4000, scoped, tag = 'input window, operand 1, single buffered']
    #allocation6 [shape = 's32[1]{0}', space=sflag, size = 0x4, scoped, tag = 'scoped memory for tpu_custom_call.1']
    #allocation7 [shape = 'u8[8192]{0}', space=vmem, size = 0x2000, scoped, tag = 'output window, operand 0, single buffered']
    %8 = vsyncpa [#allocation3], 0
    %9 = vsyncpa [#allocation6], 0
    %10 = vsyncpa [#allocation4], 0
    // Predicated region
    $region2: #{tpu_custom_call.1} parent=1 // pred_check
      _
    $region3: #{tpu_custom_call.1} parent=1 // pred_check_branch
      %12 = sbr.rel (0) target = $region5
    $region4: #{tpu_custom_call.1} parent=1 // pred_region
      %s14 = ssub.s32 256, 256
      %15 = vsyncadd [#allocation3], %s14
      %s16 = sshll.u32 [#allocation2], 4
      %s17 = int_to_ptr.vmem [resolvable:$true] %s16
      %22 = dma.hbm_to_vmem [thread:$0]  %s0, 256, %s17, [#allocation3], 128, 128, 8
    $region5: #{tpu_custom_call.1} parent=1 // pred_fallthru
      _
    // Predicated region
    $region6: #{tpu_custom_call.1} parent=1 // pred_check
      _
    $region7: #{tpu_custom_call.1} parent=1 // pred_check_branch
      %24 = sbr.rel (0) target = $region9
    $region8: #{tpu_custom_call.1} parent=1 // pred_region
      %s26 = ssub.s32 512, 512
      %27 = vsyncadd [#allocation6], %s26
      %s28 = sshll.u32 [#allocation5], 4
      %s29 = int_to_ptr.vmem [resolvable:$true] %s28
      %34 = dma.hbm_to_vmem [thread:$0]  %s1, 512, %s29, [#allocation6], 128, 128, 8
    $region9: #{tpu_custom_call.1} parent=1 // pred_fallthru
      _
    // Predicated region
    $region10: #{tpu_custom_call.1} parent=1 // pred_check
      _
    $region11: #{tpu_custom_call.1} parent=1 // pred_check_branch
      %36 = sbr.rel (0) target = $region13
    $region12: #{tpu_custom_call.1} parent=1 // pred_region
      _
    $region13: #{tpu_custom_call.1} parent=1 // pred_fallthru
      _
    // Predicated region
    $region14: #{tpu_custom_call.1} parent=1 // pred_check
      _
    $region15: #{tpu_custom_call.1} parent=1 // pred_check_branch
      %38 = sbr.rel (0) target = $region17
    $region16: #{tpu_custom_call.1} parent=1 // pred_region
      %39 = dma.done [#allocation3], 256
    $region17: #{tpu_custom_call.1} parent=1 // pred_fallthru
      _
    // Predicated region
    $region18: #{tpu_custom_call.1} parent=1 // pred_check
      _
    $region19: #{tpu_custom_call.1} parent=1 // pred_check_branch
      %41 = sbr.rel (0) target = $region21
    $region20: #{tpu_custom_call.1} parent=1 // pred_region
      %42 = dma.done [#allocation6], 512
    $region21: #{tpu_custom_call.1} parent=1 // pred_fallthru
      _
    %v43 = vld [vmem:[#allocation2] sm:$0xff]
    %v44 = vld [vmem:[#allocation2 + $0x8] sm:$0xff]
    %v45 = vld [vmem:[#allocation5] sm:$0xff]
    %v46 = vld [vmem:[#allocation5 + $0x8] sm:$0xff]
    %v47 = vld [vmem:[#allocation5 + $0x10] sm:$0xff]
    %v48 = vld [vmem:[#allocation5 + $0x18] sm:$0xff]
    %v49 = vld [vmem:[%s2] sm:$0x1]
    %v51 = vlaneseq
    %v52 = vshrl.u32 %v51, 7
    %v53 = vsub.s32 0, %v52
    %v54 = vrot.slane %v49, %v53
    %vm56 = vcmask 261120
    %v58 = vsel %vm56, %v43, 0
    %v61 = vsel %vm56, %v44, 0
    %63 = vmatprep.subr.mxu0 0.0
    %64 = vmatpush1.msra.mxu0 0.0
    %65 = vmatprep.subr.mxu0 0.0
    %66 = vmatpush1.msra.mxu0 0.0
    %67 = vmatprep.subr.mxu0 0.0
    %68 = vmatpush1.msra.mxu0 0.0
    %69 = vmatprep.subr.mxu0 0.0
    %70 = vmatpush1.msra.mxu0 0.0
    %71 = vmatprep.subr.mxu0 0.0
    %72 = vmatpush1.msra.mxu0 0.0
    %73 = vmatprep.subr.mxu0 0.0
    %74 = vmatpush1.msra.mxu0 0.0
    %75 = vmatprep.subr.mxu0 0.0
    %76 = vmatpush1.msra.mxu0 0.0
    %77 = vmatprep.subr.mxu0 0.0
    %78 = vmatpush1.msra.mxu0 0.0
    %79 = vmatprep.subr.mxu0 0.0
    %80 = vmatpush1.msra.mxu0 0.0
    %81 = vmatprep.subr.mxu0 0.0
    %82 = vmatpush1.msra.mxu0 0.0
    %83 = vmatprep.subr.mxu0 0.0
    %84 = vmatpush1.msra.mxu0 0.0
    %85 = vmatprep.subr.mxu0 0.0
    %86 = vmatpush1.msra.mxu0 0.0
    %87 = vmatprep.subr.mxu0 0.0
    %88 = vmatpush1.msra.mxu0 %v48
    %89 = vmatprep.subr.mxu0 0.0
    %90 = vmatpush1.msra.mxu0 %v47
    %91 = vmatprep.subr.mxu0 0.0
    %92 = vmatpush1.msra.mxu0 %v46
    %93 = vmatprep.subr.mxu0 0.0
    %94 = vmatpush1.msra.mxu0 %v45
    %95 = vmatprep.subr.mxu0 0.0
    %96 = vmatpush2.msra.mxu0 0.0
    %97 = vmatprep.subr.mxu0 0.0
    %98 = vmatpush2.msra.mxu0 0.0
    %99 = vmatprep.subr.mxu0 0.0
    %100 = vmatpush2.msra.mxu0 0.0
    %101 = vmatprep.subr.mxu0 0.0
    %102 = vmatpush2.msra.mxu0 0.0
    %103 = vmatprep.subr.mxu0 0.0
    %104 = vmatpush2.msra.mxu0 0.0
    %105 = vmatprep.subr.mxu0 0.0
    %106 = vmatpush2.msra.mxu0 0.0
    %107 = vmatprep.subr.mxu0 0.0
    %108 = vmatpush2.msra.mxu0 0.0
    %109 = vmatprep.subr.mxu0 0.0
    %110 = vmatpush2.msra.mxu0 0.0
    %111 = vmatprep.subr.mxu0 0.0
    %112 = vmatpush2.msra.mxu0 0.0
    %113 = vmatprep.subr.mxu0 0.0
    %114 = vmatpush2.msra.mxu0 0.0
    %115 = vmatprep.subr.mxu0 0.0
    %116 = vmatpush2.msra.mxu0 0.0
    %117 = vmatprep.subr.mxu0 0.0
    %118 = vmatpush2.msra.mxu0 0.0
    %119 = vmatprep.subr.mxu0 0.0
    %120 = vmatpush2.msra.mxu0 0.0
    %121 = vmatprep.subr.mxu0 0.0
    %122 = vmatpush2.msra.mxu0 0.0
    %123 = vmatprep.subr.mxu0 0.0
    %124 = vmatpush2.msra.mxu0 0.0
    %125 = vmatprep.subr.mxu0 0.0
    %126 = vmatpush2.msra.mxu0 0.0
    %127 = vmatprep.mubr.f32.mxu0 0.0
    %128 = vmatmul.mubr.f32.gmra.mxu0 %v58
    %v129 = vpop.f32.mrf.mxu0
    %v130 = vadd.f32 %v54, %v129
    %v131 = vpop.f32.mrf.mxu0
    %132 = vmatprep.mubr.f32.mxu0 0.0
    %133 = vmatmul.mubr.f32.gmra.mxu0 %v61
    %v134 = vpop.f32.mrf.mxu0
    %v135 = vadd.f32 %v54, %v134
    %v136 = vpop.f32.mrf.mxu0
    %137 = vdwg.mxu0
    %138 = vst.msk [vmem:[#allocation7] sm:$0xff] %vm56, %v130
    %139 = vst.msk [vmem:[#allocation7 + $0x8] sm:$0xff] %vm56, %v135
    // Predicated region
    $region22: #{tpu_custom_call.1} parent=1 // pred_check
      _
    $region23: #{tpu_custom_call.1} parent=1 // pred_check_branch
      %141 = sbr.rel (0) target = $region25
    $region24: #{tpu_custom_call.1} parent=1 // pred_region
      %s143 = ssub.s32 256, 256
      %144 = vsyncadd [#allocation4], %s143
      %s145 = sshll.u32 [#allocation7], 4
      %s146 = int_to_ptr.vmem [resolvable:$true] %s145
      %151 = dma.vmem_to_hbm [thread:$0]  %s146, 256, %s3, [#allocation4], 128, 128, 8
    $region25: #{tpu_custom_call.1} parent=1 // pred_fallthru
      _
    // Predicated region
    $region26: #{tpu_custom_call.1} parent=1 // pred_check
      _
    $region27: #{tpu_custom_call.1} parent=1 // pred_check_branch
      %153 = sbr.rel (0) target = $region29
    $region28: #{tpu_custom_call.1} parent=1 // pred_region
      %154 = dma.done [#allocation4], 256
    $region29: #{tpu_custom_call.1} parent=1 // pred_fallthru
      _
    %155 = vsyncpa [#allocation3], 1
    %156 = vsyncpa [#allocation6], 1
    %157 = vsyncpa [#allocation4], 1

</llo_original>
